<compile_context>
chip_gen: v7x
topology: tpu7x:2x2x1
jax: 0.10.0
libtpu: 0.0.40
codegen_flags: <defaults>
</compile_context>

<pallas_src>
import functools

import jax
import jax.numpy as jnp
from jax import lax
from jax.experimental import pallas as pl
from jax.experimental.pallas import tpu as pltpu

EPS = 1e-5          # nn.BatchNorm2d default eps
NEG_SLOPE = 0.2     # LeakyReLU(0.2)


def _round_up(x, m):
    return ((x + m - 1) // m) * m


def _vmem_capacity_bytes():
    """Physical per-core VMEM; conservative fallback (v7x = 64 MiB)."""
    try:
        return int(pltpu.get_tpu_info().vmem_capacity_bytes)
    except Exception:
        return 64 << 20


# --------------------------------------------------------------------------
# Phase 1: conv-as-matmul per (M-tile, Cout-tile), plus partial BN statistics.
# --------------------------------------------------------------------------
def _conv_stats_kernel(p_ref, w_ref, y_ref, stats_ref):
    # p_ref:     (TM, K_pad)  bf16 im2col patch tile
    # w_ref:     (K_pad, TN)  bf16 flattened conv weight (resident)
    # y_ref:     (TM, TN)     bf16 conv output tile
    # stats_ref: (8, TN)      f32: row 0 = partial sum, row 1 = partial sum-sq
    y = jnp.dot(p_ref[...], w_ref[...], preferred_element_type=jnp.float32)
    y_ref[...] = y.astype(y_ref.dtype)
    # No bias (cancels under training-mode BN) and no row mask: zero-padded
    # tail rows / padded K columns contribute exactly 0 to these sums.
    s1 = jnp.sum(y, axis=0, keepdims=True)          # (1, TN)
    s2 = jnp.sum(y * y, axis=0, keepdims=True)      # (1, TN)
    ridx = lax.broadcasted_iota(jnp.int32, stats_ref.shape, 0)
    stats_ref[...] = jnp.where(ridx == 0, s1, jnp.where(ridx == 1, s2, 0.0))


# --------------------------------------------------------------------------
# Phase 2: folded per-channel BN affine + LeakyReLU (in place, lane-dense).
# --------------------------------------------------------------------------
def _bn_lrelu_kernel(y_ref, scale_ref, shift_ref, o_ref):
    z = y_ref[...].astype(jnp.float32) * scale_ref[...] + shift_ref[...]
    o_ref[...] = jnp.where(z >= 0, z, NEG_SLOPE * z).astype(o_ref.dtype)


def downsample_forward(x, weight_hwio, bias, gamma, beta, *, stride,
                       kernel_size=3, padding=1, data_format="NCHW"):
    """x: [N,Cin,H,W] (NCHW, default) or [N,H,W,Cin]; weight_hwio: [kh,kw,Cin,Cout]."""
    del bias  # Conv bias cancels exactly under training-mode BatchNorm.

    if data_format == "NCHW":
        N, Cin, H, W = x.shape
        x_nhwc = jnp.transpose(x, (0, 2, 3, 1))
    else:  # "NHWC" callers skip both layout transposes entirely.
        N, H, W, Cin = x.shape
        x_nhwc = x
    kh, kw, _, Cout = weight_hwio.shape
    assert kh == kernel_size and kw == kernel_size

    Hout = (H + 2 * padding - kernel_size) // stride + 1
    Wout = (W + 2 * padding - kernel_size) // stride + 1

    K = kernel_size * kernel_size * Cin
    M = N * Hout * Wout
    K_pad = _round_up(K, 128)          # lane-dense contraction dim
    C_pad = _round_up(Cout, 128)       # lane-dense output channels

    # ---- generation-aware VMEM budget (v5e/v6e: 128 MiB, v7x: 64 MiB) ----
    cap = _vmem_capacity_bytes()
    budget = int(cap * 0.70)

    # ---- Cout tile TN: only shrink when the resident weight block is huge ----
    tn_candidates = [C_pad // d for d in range(1, C_pad // 128 + 1)
                     if C_pad % d == 0 and (C_pad // d) % 128 == 0]
    TN = 128
    for cand in tn_candidates:                       # descending
        if 2 * (K_pad * cand * 2) <= budget // 3:    # double-buffered bf16 weight
            TN = cand
            break
    Gn = C_pad // TN

    # ---- M tile TM: as large as the double-buffered budget allows ----
    bytes_weight = 2 * (K_pad * TN * 2)              # bf16, double-buffered
    bytes_stats = 2 * (8 * TN * 4)
    per_row = 2 * (K_pad * 2 + TN * 2)               # patches + y per M row (bf16, dbuf)
    tm_budget = max(16, (budget - bytes_weight - bytes_stats) // per_row)
    TM = max(16, (tm_budget // 16) * 16)
    TM = min(TM, _round_up(M, 16))
    if M > 16:                                       # keep >= 2 tiles for 2 TCs (v7x)
        TM = min(TM, _round_up((M + 1) // 2, 16))
    M_pad = _round_up(M, TM)
    G = M_pad // TM

    need1 = bytes_weight + bytes_stats + TM * per_row
    vmem1 = int(min(0.92 * cap, max(32 << 20, need1 + (4 << 20))))

    # ---- glue: layout + im2col patch extraction in bf16 (JAX) ----
    xb = x_nhwc.astype(jnp.bfloat16)
    xpad = jnp.pad(xb, ((0, 0), (padding, padding), (padding, padding), (0, 0)))
    slices = []
    for i in range(kernel_size):
        for j in range(kernel_size):
            slices.append(
                xpad[:, i:i + (Hout - 1) * stride + 1:stride,
                        j:j + (Wout - 1) * stride + 1:stride, :]
            )  # each: [N, Hout, Wout, Cin]
    patches = jnp.concatenate(slices, axis=-1).reshape(M, K)   # (kh,kw,ci) order
    patches = jnp.pad(patches, ((0, M_pad - M), (0, K_pad - K)))

    wmat = jnp.pad(weight_hwio.reshape(K, Cout).astype(jnp.bfloat16),
                   ((0, K_pad - K), (0, C_pad - Cout)))
    g_pad = jnp.pad(gamma.astype(jnp.float32), (0, C_pad - Cout))
    b_pad = jnp.pad(beta.astype(jnp.float32), (0, C_pad - Cout))

    # ---- phase 1: conv matmul (bf16 in / f32 acc) + partial BN stats ----
    y_flat, stats = pl.pallas_call(
        _conv_stats_kernel,
        out_shape=(jax.ShapeDtypeStruct((M_pad, C_pad), jnp.bfloat16),
                   jax.ShapeDtypeStruct((G * 8, C_pad), jnp.float32)),
        grid=(G, Gn),
        in_specs=[
            pl.BlockSpec((TM, K_pad), lambda i, n: (i, 0)),
            pl.BlockSpec((K_pad, TN), lambda i, n: (0, n)),   # resident weights
        ],
        out_specs=(
            pl.BlockSpec((TM, TN), lambda i, n: (i, n)),
            pl.BlockSpec((8, TN), lambda i, n: (i, n)),
        ),
        compiler_params=pltpu.CompilerParams(
            dimension_semantics=("parallel", "parallel"),
            vmem_limit_bytes=vmem1),
    )(patches, wmat)

    # ---- tiny cross-tile reduction + BN folding (JAX, O(Cout)) ----
    st = stats.reshape(G, 8, C_pad)
    s1 = jnp.sum(st[:, 0, :], axis=0)
    s2 = jnp.sum(st[:, 1, :], axis=0)
    mean = s1 / M
    # NOTE: E[x^2]-E[x]^2 in f32 can cancel when |mean| >> std; acceptable for
    # conv activations here.  (Welford / two-pass would be the robust fix.)
    var = jnp.maximum(s2 / M - mean * mean, 0.0)     # biased (training-mode) variance
    inv_std = lax.rsqrt(var + EPS)
    scale = (g_pad * inv_std).reshape(1, C_pad)
    shift = (b_pad - mean * g_pad * inv_std).reshape(1, C_pad)

    # ---- phase 2: BN affine + LeakyReLU, in place, independently sized tile ----
    per_row2 = 2 * (2 * C_pad * 2)                   # bf16 in + bf16 out, dbuf
    rows2 = max(TM, (budget // per_row2 // 16) * 16)
    f_budget = max(1, rows2 // TM)
    f_cap = max(1, G // 2) if G > 1 else 1           # keep >= 2 tiles when possible
    f = 1
    for cand in range(min(f_budget, f_cap), 0, -1):
        if G % cand == 0:
            f = cand
            break
    TM2, G2 = TM * f, G // f
    vmem2 = int(min(0.92 * cap, max(32 << 20, TM2 * per_row2 + (2 << 20))))

    out_flat = pl.pallas_call(
        _bn_lrelu_kernel,
        out_shape=jax.ShapeDtypeStruct((M_pad, C_pad), jnp.bfloat16),
        grid=(G2,),
        in_specs=[
            pl.BlockSpec((TM2, C_pad), lambda i: (i, 0)),
            pl.BlockSpec((1, C_pad), lambda i: (0, 0)),
            pl.BlockSpec((1, C_pad), lambda i: (0, 0)),
        ],
        out_specs=pl.BlockSpec((TM2, C_pad), lambda i: (i, 0)),
        input_output_aliases={0: 0},                 # in place on the conv tensor
        compiler_params=pltpu.CompilerParams(
            dimension_semantics=("parallel",),
            vmem_limit_bytes=vmem2),
    )(y_flat, scale, shift)

    out_nhwc = out_flat[:M, :Cout].astype(jnp.float32).reshape(N, Hout, Wout, Cout)
    if data_format == "NCHW":
        return jnp.transpose(out_nhwc, (0, 3, 1, 2))
    return out_nhwc


def _reference(x_nchw, weight_hwio, bias, gamma, beta, *, stride, padding=1):
    """Pure-JAX f32 reference (conv + bias + training-mode BN + LeakyReLU)."""
    w_oihw = jnp.transpose(weight_hwio, (3, 2, 0, 1))
    y = lax.conv_general_dilated(
        x_nchw, w_oihw, window_strides=(stride, stride),
        padding=[(padding, padding), (padding, padding)],
        dimension_numbers=("NCHW", "OIHW", "NCHW"))
    y = y + bias[None, :, None, None]
    mean = jnp.mean(y, axis=(0, 2, 3), keepdims=True)
    var = jnp.mean((y - mean) ** 2, axis=(0, 2, 3), keepdims=True)
    z = gamma[None, :, None, None] * (y - mean) * lax.rsqrt(var + EPS) \
        + beta[None, :, None, None]
    return jnp.where(z >= 0, z, NEG_SLOPE * z)


if __name__ == "__main__":
    key = jax.random.PRNGKey(0)
    k_x, k_w, k_b, k_g, k_be = jax.random.split(key, 5)

    N, Cin, H, W = 2, 4, 16, 16
    Cout, ksize, stride, padding = 8, 3, 2, 1

    x = jax.random.normal(k_x, (N, Cin, H, W), dtype=jnp.float32)
    weight = 0.1 * jax.random.normal(k_w, (ksize, ksize, Cin, Cout), jnp.float32)
    bias = 0.05 * jax.random.normal(k_b, (Cout,), jnp.float32)
    gamma = 1.0 + 0.1 * jax.random.normal(k_g, (Cout,), jnp.float32)
    beta = 0.1 * jax.random.normal(k_be, (Cout,), jnp.float32)

    fwd = jax.jit(functools.partial(downsample_forward, stride=stride,
                                    kernel_size=ksize, padding=padding))
    out = jax.block_until_ready(fwd(x, weight, bias, gamma, beta))

    ref = _reference(x, weight, bias, gamma, beta, stride=stride, padding=padding)
    assert out.shape == (N, Cout, H // stride, W // stride), out.shape
    # bf16 MXU operands + bf16 intermediate -> relaxed tolerance vs the f32 ref.
    max_err = float(jnp.max(jnp.abs(out - ref)))
    assert max_err < 5e-2, max_err

    print("KERNEL_OK")
</pallas_src>

<mosaic_0001>
module attributes {stable_mosaic.version = 11 : i64} {
  func.func @_conv_stats_kernel(%arg0: i32, %arg1: i32, %arg2: memref<64x128xbf16, #tpu.memory_space<vmem>>, %arg3: memref<128x128xbf16, #tpu.memory_space<vmem>>, %arg4: memref<64x128xbf16, #tpu.memory_space<vmem>>, %arg5: memref<8x128xf32, #tpu.memory_space<vmem>>) attributes {dimension_semantics = [#tpu.dimension_semantics<parallel>, #tpu.dimension_semantics<parallel>], iteration_bounds = array<i64: 2, 1>, scalar_prefetch = 0 : i64, scratch_operands = 0 : i64, tpu.core_type = #tpu.core_type<tc>, window_params = [{transform_indices = @transform_0, window_bounds = array<i64: 64, 128>}, {transform_indices = @transform_1, window_bounds = array<i64: 128, 128>}, {transform_indices = @transform_2, window_bounds = array<i64: 64, 128>}, {transform_indices = @transform_3, window_bounds = array<i64: 8, 128>}]} {
    %c0 = arith.constant 0 : index
    %c0_0 = arith.constant 0 : index
    %0 = vector.load %arg2[%c0, %c0_0] : memref<64x128xbf16, #tpu.memory_space<vmem>>, vector<64x128xbf16>
    %c0_1 = arith.constant 0 : index
    %c0_2 = arith.constant 0 : index
    %1 = vector.load %arg3[%c0_1, %c0_2] : memref<128x128xbf16, #tpu.memory_space<vmem>>, vector<128x128xbf16>
    %cst = arith.constant dense<0.000000e+00> : vector<64x128xf32>
    %2 = tpu.matmul %0, %1, %cst {dimension_numbers = #tpu.dot_dimension_numbers<[1], [0], [0], [1], [0, 0, 1, 1], [], []>} : vector<64x128xbf16>, vector<128x128xbf16>, vector<64x128xf32> -> vector<64x128xf32>
    %3 = arith.truncf %2 : vector<64x128xf32> to vector<64x128xbf16>
    %c0_3 = arith.constant 0 : index
    %c0_4 = arith.constant 0 : index
    %4 = vector.load %arg4[%c0_3, %c0_4] : memref<64x128xbf16, #tpu.memory_space<vmem>>, vector<64x128xbf16>
    tpu.vector_store %arg4[%c0_3, %c0_4], %3 {strides = array<i32>} : memref<64x128xbf16, #tpu.memory_space<vmem>>, vector<64x128xbf16>,
    %cst_5 = arith.constant dense<0.000000e+00> : vector<128xf32>
    %5 = vector.multi_reduction <add>, %2, %cst_5 [0] : vector<64x128xf32> to vector<128xf32>
    %6 = vector.shape_cast %5 : vector<128xf32> to vector<1x128xf32>
    %7 = arith.mulf %2, %2 : vector<64x128xf32>
    %cst_6 = arith.constant dense<0.000000e+00> : vector<128xf32>
    %8 = vector.multi_reduction <add>, %7, %cst_6 [0] : vector<64x128xf32> to vector<128xf32>
    %9 = vector.shape_cast %8 : vector<128xf32> to vector<1x128xf32>
    %10 = tpu.iota {dimensions = array<i32: 0>} : vector<8x128xi32>
    %c0_i32 = arith.constant 0 : i32
    %11 = vector.broadcast %c0_i32 : i32 to vector<8x128xi32>
    %12 = arith.cmpi eq, %10, %11 : vector<8x128xi32>
    %c1_i32 = arith.constant 1 : i32
    %13 = vector.broadcast %c1_i32 : i32 to vector<8x128xi32>
    %14 = arith.cmpi eq, %10, %13 : vector<8x128xi32>
    %cst_7 = arith.constant 0.000000e+00 : f32
    %15 = vector.shape_cast %9 : vector<1x128xf32> to vector<1x128xf32>
    %16 = vector.broadcast %15 : vector<1x128xf32> to vector<8x128xf32>
    %17 = vector.broadcast %cst_7 : f32 to vector<8x128xf32>
    %18 = arith.select %14, %16, %17 : vector<8x128xi1>, vector<8x128xf32>
    %19 = vector.shape_cast %6 : vector<1x128xf32> to vector<1x128xf32>
    %20 = vector.broadcast %19 : vector<1x128xf32> to vector<8x128xf32>
    %21 = arith.select %12, %20, %18 : vector<8x128xi1>, vector<8x128xf32>
    %c0_8 = arith.constant 0 : index
    %c0_9 = arith.constant 0 : index
    %22 = vector.load %arg5[%c0_8, %c0_9] : memref<8x128xf32, #tpu.memory_space<vmem>>, vector<8x128xf32>
    tpu.vector_store %arg5[%c0_8, %c0_9], %21 {strides = array<i32>} : memref<8x128xf32, #tpu.memory_space<vmem>>, vector<8x128xf32>,
    return
  }
  func.func @transform_0(%arg0: i32, %arg1: i32) -> (i32, i32) {
    %c0_i32 = arith.constant 0 : i32
    %c0_i32_0 = arith.constant 0 : i32
    return %arg0, %c0_i32 : i32, i32
  }
  func.func @transform_1(%arg0: i32, %arg1: i32) -> (i32, i32) {
    %c0_i32 = arith.constant 0 : i32
    %c0_i32_0 = arith.constant 0 : i32
    return %c0_i32, %arg1 : i32, i32
  }
  func.func @transform_2(%arg0: i32, %arg1: i32) -> (i32, i32) {
    %c0_i32 = arith.constant 0 : i32
    return %arg0, %arg1 : i32, i32
  }
  func.func @transform_3(%arg0: i32, %arg1: i32) -> (i32, i32) {
    %c0_i32 = arith.constant 0 : i32
    return %arg0, %arg1 : i32, i32
  }
}

module attributes {stable_mosaic.version = 11 : i64} {
  func.func @_bn_lrelu_kernel(%arg0: i32, %arg1: memref<64x128xbf16, #tpu.memory_space<vmem>>, %arg2: memref<1x128xf32, #tpu.memory_space<vmem>>, %arg3: memref<1x128xf32, #tpu.memory_space<vmem>>, %arg4: memref<64x128xbf16, #tpu.memory_space<vmem>>) attributes {dimension_semantics = [#tpu.dimension_semantics<parallel>], iteration_bounds = array<i64: 2>, scalar_prefetch = 0 : i64, scratch_operands = 0 : i64, tpu.core_type = #tpu.core_type<tc>, window_params = [{transform_indices = @transform_0, window_bounds = array<i64: 64, 128>}, {pipeline_mode = #tpu.pipeline_mode<synchronous>, transform_indices = @transform_1, window_bounds = array<i64: 1, 128>}, {pipeline_mode = #tpu.pipeline_mode<synchronous>, transform_indices = @transform_2, window_bounds = array<i64: 1, 128>}, {transform_indices = @transform_3, window_bounds = array<i64: 64, 128>}]} {
    %c0 = arith.constant 0 : index
    %c0_0 = arith.constant 0 : index
    %0 = vector.load %arg1[%c0, %c0_0] : memref<64x128xbf16, #tpu.memory_space<vmem>>, vector<64x128xbf16>
    %1 = arith.extf %0 : vector<64x128xbf16> to vector<64x128xf32>
    %c0_1 = arith.constant 0 : index
    %c0_2 = arith.constant 0 : index
    %2 = vector.load %arg2[%c0_1, %c0_2] : memref<1x128xf32, #tpu.memory_space<vmem>>, vector<1x128xf32>
    %3 = vector.broadcast %2 : vector<1x128xf32> to vector<64x128xf32>
    %4 = arith.mulf %1, %3 : vector<64x128xf32>
    %c0_3 = arith.constant 0 : index
    %c0_4 = arith.constant 0 : index
    %5 = vector.load %arg3[%c0_3, %c0_4] : memref<1x128xf32, #tpu.memory_space<vmem>>, vector<1x128xf32>
    %6 = vector.broadcast %5 : vector<1x128xf32> to vector<64x128xf32>
    %7 = arith.addf %4, %6 : vector<64x128xf32>
    %cst = arith.constant 0.000000e+00 : f32
    %8 = vector.broadcast %cst : f32 to vector<64x128xf32>
    %9 = arith.cmpf oge, %7, %8 : vector<64x128xf32>
    %cst_5 = arith.constant 2.000000e-01 : f32
    %10 = vector.broadcast %cst_5 : f32 to vector<64x128xf32>
    %11 = arith.mulf %10, %7 : vector<64x128xf32>
    %12 = arith.select %9, %7, %11 : vector<64x128xi1>, vector<64x128xf32>
    %13 = arith.truncf %12 : vector<64x128xf32> to vector<64x128xbf16>
    %c0_6 = arith.constant 0 : index
    %c0_7 = arith.constant 0 : index
    %14 = vector.load %arg4[%c0_6, %c0_7] : memref<64x128xbf16, #tpu.memory_space<vmem>>, vector<64x128xbf16>
    tpu.vector_store %arg4[%c0_6, %c0_7], %13 {strides = array<i32>} : memref<64x128xbf16, #tpu.memory_space<vmem>>, vector<64x128xbf16>,
    return
  }
  func.func @transform_0(%arg0: i32) -> (i32, i32) {
    %c0_i32 = arith.constant 0 : i32
    %c0_i32_0 = arith.constant 0 : i32
    return %arg0, %c0_i32 : i32, i32
  }
  func.func @transform_1(%arg0: i32) -> (i32, i32) {
    %c0_i32 = arith.constant 0 : i32
    %c0_i32_0 = arith.constant 0 : i32
    %c0_i32_1 = arith.constant 0 : i32
    return %c0_i32, %c0_i32_0 : i32, i32
  }
  func.func @transform_2(%arg0: i32) -> (i32, i32) {
    %c0_i32 = arith.constant 0 : i32
    %c0_i32_0 = arith.constant 0 : i32
    %c0_i32_1 = arith.constant 0 : i32
    return %c0_i32, %c0_i32_0 : i32, i32
  }
  func.func @transform_3(%arg0: i32) -> (i32, i32) {
    %c0_i32 = arith.constant 0 : i32
    %c0_i32_0 = arith.constant 0 : i32
    return %arg0, %c0_i32 : i32, i32
  }
}

</mosaic_0001>

<llo_original>
// kernel: downsample_forward.3
$region0: #{downsample_forward.3}
  #allocation0 [shape = 'u32[]', space=smem, size = 0x4, offset = 0x4, fixed_abs, tag = 'smem constant byte address 0x4 - core index']
  #allocation1 [shape = 'u32[144,128]{1,0:T(1,128)}', space=vmem, size = 0x12000, scoped, tag = 'internal scratch']
  %s0 = inlined_call_operand.vmem [shape: bf16[128,128], index: 0, kind: input, shape index: {}, may-alias: {0,3}]
  %s1 = inlined_call_operand.vmem [shape: f32[1,128], index: 1, kind: input, shape index: {}]
  %s2 = inlined_call_operand.vmem [shape: f32[1,128], index: 2, kind: input, shape index: {}]
  %s3 = inlined_call_operand.vmem [shape: bf16[128,128], index: 3, kind: output, shape index: {}, may-alias: {0,3}]
  %s4 = sld [smem:[#allocation0]]
  $region45: #{downsample_forward.3} parent=0
    _
  %s6 = ssub.s32 1, %s4
  %s7 = scalar_select 0, %s6, %s4
  loop: start=0, step=1, limit=4
  $region2: #{downsample_forward.3} parent=0 // loop_pre_header
    _
  $region3: #{downsample_forward.3} parent=0 // loop_header
    %s9 = sphi 0, %s13
    %p10 = scmp.ge.s32.totalorder %s9, 4
    %s19 = sphi 0, %s21
    %s22 = sphi 0, %s19
    %s23 = sphi 0, %s22
    %s39 = sphi 0, %s23
    %s43 = sphi 0, %s43
    %s45 = sphi 0, %s43
    %s46 = sphi 0, %s45
    %s60 = sphi 0, %s46
    %s64 = sphi 0, %s64
    %s66 = sphi 0, %s64
    %s67 = sphi 0, %s66
    %s81 = sphi 0, %s67
    %s87 = sphi 0, %s89
    %s90 = sphi 0, %s87
    %s91 = sphi 0, %s90
    %s107 = sphi 0, %s91
  $region4: #{downsample_forward.3} parent=0 // loop_header_branch
    %12 = sbr.rel (%p10) target = $region8
  $region5: #{downsample_forward.3} parent=0 // loop_body
    %s14 = ssub.s32 %s9, 1
    %s15 = ssub.s32 %s9, 2
    %s16 = sadd.s32 %s9, 1
    %s17 = ssub.s32 %s9, %s16
    %p18 = scmp.eq.s32.totalorder %s17, 0
    %s20 = sadd.s32 %s19, 1
    %s21 = scalar_select %p18, %s19, %s20
    %p24 = pneg %p18
    %p25 = scmp.eq.s32.totalorder %s9, 1
    %p26 = por %p24, %p25
    %p27 = scmp.ne.s32.totalorder %s19, %s22
    %p28 = scmp.eq.s32.totalorder %s9, 0
    %p29 = por %p27, %p28
    %p30 = scmp.ne.s32.totalorder %s19, %s22
    %p31 = scmp.eq.s32.totalorder %s14, 1
    %p32 = por %p30, %p31
    %p33 = scmp.ne.s32.totalorder %s22, %s23
    %p34 = scmp.eq.s32.totalorder %s14, 0
    %p35 = por %p33, %p34
    %p36 = scmp.ne.s32.totalorder %s22, %s23
    %p37 = scmp.eq.s32.totalorder %s15, 1
    %p38 = por %p36, %p37
    %p40 = scmp.ne.s32.totalorder %s23, %s39
    %p41 = scmp.eq.s32.totalorder %s15, 0
    %p42 = por %p40, %p41
    %s44 = sadd.s32 %s43, 1
    %p47 = scmp.eq.s32.totalorder %s9, 1
    %p48 = scmp.ne.s32.totalorder %s43, %s45
    %p49 = scmp.eq.s32.totalorder %s9, 0
    %p50 = por %p48, %p49
    %p51 = scmp.ne.s32.totalorder %s43, %s45
    %p52 = scmp.eq.s32.totalorder %s14, 1
    %p53 = por %p51, %p52
    %p54 = scmp.ne.s32.totalorder %s45, %s46
    %p55 = scmp.eq.s32.totalorder %s14, 0
    %p56 = por %p54, %p55
    %p57 = scmp.ne.s32.totalorder %s45, %s46
    %p58 = scmp.eq.s32.totalorder %s15, 1
    %p59 = por %p57, %p58
    %p61 = scmp.ne.s32.totalorder %s46, %s60
    %p62 = scmp.eq.s32.totalorder %s15, 0
    %p63 = por %p61, %p62
    %s65 = sadd.s32 %s64, 1
    %p68 = scmp.eq.s32.totalorder %s9, 1
    %p69 = scmp.ne.s32.totalorder %s64, %s66
    %p70 = scmp.eq.s32.totalorder %s9, 0
    %p71 = por %p69, %p70
    %p72 = scmp.ne.s32.totalorder %s64, %s66
    %p73 = scmp.eq.s32.totalorder %s14, 1
    %p74 = por %p72, %p73
    %p75 = scmp.ne.s32.totalorder %s66, %s67
    %p76 = scmp.eq.s32.totalorder %s14, 0
    %p77 = por %p75, %p76
    %p78 = scmp.ne.s32.totalorder %s66, %s67
    %p79 = scmp.eq.s32.totalorder %s15, 1
    %p80 = por %p78, %p79
    %p82 = scmp.ne.s32.totalorder %s67, %s81
    %p83 = scmp.eq.s32.totalorder %s15, 0
    %p84 = por %p82, %p83
    %s85 = ssub.s32 %s9, %s16
    %p86 = scmp.eq.s32.totalorder %s85, 0
    %s88 = sadd.s32 %s87, 1
    %s89 = scalar_select %p86, %s87, %s88
    %p92 = pneg %p86
    %p93 = scmp.eq.s32.totalorder %s9, 1
    %p94 = por %p92, %p93
    %p95 = scmp.ne.s32.totalorder %s87, %s90
    %p96 = scmp.eq.s32.totalorder %s9, 0
    %p97 = por %p95, %p96
    %p98 = scmp.ne.s32.totalorder %s87, %s90
    %p99 = scmp.eq.s32.totalorder %s14, 1
    %p100 = por %p98, %p99
    %p101 = scmp.ne.s32.totalorder %s90, %s91
    %p102 = scmp.eq.s32.totalorder %s14, 0
    %p103 = por %p101, %p102
    %p104 = scmp.ne.s32.totalorder %s90, %s91
    %p105 = scmp.eq.s32.totalorder %s15, 1
    %p106 = por %p104, %p105
    %p108 = scmp.ne.s32.totalorder %s91, %s107
    %p109 = scmp.eq.s32.totalorder %s15, 0
    %p110 = por %p108, %p109
    %p111 = scmp.le.s32.totalorder 1, %s9
    %p112 = scmp.lt.s32.totalorder %s9, 3
    %p113 = pnand %p111, %p112
    %p114 = pneg %p113
    // Predicated region
    $region9: #{downsample_forward.3} parent=5 // pred_check
      _
    $region10: #{downsample_forward.3} parent=5 // pred_check_branch
      %116 = sbr.rel (%p113) target = $region12
    $region11: #{downsample_forward.3} parent=5 // pred_region
      %s117 = ssub.s32 %s9, 1
      // Predicated region
      $region13: #{downsample_forward.3} parent=11 // pred_check
        %p118 = pneg %p56
      $region14: #{downsample_forward.3} parent=11 // pred_check_branch
        %120 = sbr.rel (%p118) target = $region16
      $region15: #{downsample_forward.3} parent=11 // pred_region
        _
      $region16: #{downsample_forward.3} parent=11 // pred_fallthru
        _
      // Predicated region
      $region17: #{downsample_forward.3} parent=11 // pred_check
        %p121 = pneg %p77
      $region18: #{downsample_forward.3} parent=11 // pred_check_branch
        %123 = sbr.rel (%p121) target = $region20
      $region19: #{downsample_forward.3} parent=11 // pred_region
        _
      $region20: #{downsample_forward.3} parent=11 // pred_fallthru
        _
    $region12: #{downsample_forward.3} parent=5 // pred_fallthru
      _
    %p124 = scmp.lt.s32.totalorder %s9, 2
    // Predicated region
    $region21: #{downsample_forward.3} parent=5 // pred_check
      %p125 = pneg %p124
    $region22: #{downsample_forward.3} parent=5 // pred_check_branch
      %127 = sbr.rel (%p125) target = $region24
    $region23: #{downsample_forward.3} parent=5 // pred_region
      // Predicated region
      $region25: #{downsample_forward.3} parent=23 // pred_check
        %p128 = pneg %p29
      $region26: #{downsample_forward.3} parent=23 // pred_check_branch
        %130 = sbr.rel (%p128) target = $region28
      $region27: #{downsample_forward.3} parent=23 // pred_region
        %s131 = smul.u32 8, %s9
        %p132 = scmp.lt.s32.totalorder %s131, 15
        %s133 = scalar_select %p132, %s131, 15
        %s134 = smul.addr %s133, 4
        %s135 = scalar_lea.vmem %s0, %s134
        %s136 = smul.u32 8, %s9
      $region28: #{downsample_forward.3} parent=23 // pred_fallthru
        _
    $region24: #{downsample_forward.3} parent=5 // pred_fallthru
      _
    %p137 = scmp.le.s32.totalorder 1, %s9
    %p138 = scmp.lt.s32.totalorder %s9, 3
    %p139 = pnand %p137, %p138
    %p140 = pneg %p139
    // Predicated region
    $region29: #{downsample_forward.3} parent=5 // pred_check
      _
    $region30: #{downsample_forward.3} parent=5 // pred_check_branch
      %142 = sbr.rel (%p139) target = $region32
    $region31: #{downsample_forward.3} parent=5 // pred_region
      %s143 = ssub.s32 %s9, 1
      %s144 = smul.u32 8, %s14
      %p145 = scmp.lt.s32.totalorder %s144, 15
      %s146 = scalar_select %p145, %s144, 15
      %s147 = smul.addr %s146, 4
      %s148 = scalar_lea.vmem %s0, %s147
      %p149 = pneg %p35
      %p150 = pneg %p32
      %p151 = pneg %p56
      %p152 = pneg %p53
      %p153 = pneg %p77
      %p154 = pneg %p74
      %p155 = pneg %p103
      %p156 = pneg %p100
      %s157 = smul.u32 8, %s14
      %p158 = scmp.lt.s32.totalorder %s157, 15
      %s159 = scalar_select %p158, %s157, 15
      %s160 = smul.addr %s159, 4
      %s161 = scalar_lea.vmem %s3, %s160
      %s162 = smul.u32 8, %s14
      %p163 = scmp.lt.s32.totalorder %s162, 15
      %s164 = scalar_select %p163, %s162, 15
      %s165 = smul.addr %s164, 4
      %s166 = scalar_lea.vmem %s0, %s165
      %s167 = smul.u32 8, %s14
      %s168 = smul.u32 8, %s14
      %p169 = scmp.lt.s32.totalorder %s168, 15
      %s170 = scalar_select %p169, %s168, 15
      %s171 = smul.addr %s170, 4
      %s172 = scalar_lea.vmem %s3, %s171
      %s173 = smul.u32 8, %s14
      %v174 = vld [vmem:[%s166] sm:$0xf]
      %v175 = vld [vmem:[%s166 + $0x4] sm:$0xf]
      %v176 = vld [vmem:[%s166 + $0x8] sm:$0xf]
      %v177 = vld [vmem:[%s166 + $0xc] sm:$0xf]
      %v178 = vld [vmem:[%s166 + $0x10] sm:$0xf]
      %v179 = vld [vmem:[%s166 + $0x14] sm:$0xf]
      %v180 = vld [vmem:[%s166 + $0x18] sm:$0xf]
      %v181 = vld [vmem:[%s166 + $0x1c] sm:$0xf]
      %v182 = vunpack.c.l.bf16 %v174
      %v183 = vunpack.c.l.bf16 %v175
      %v184 = vunpack.c.l.bf16 %v176
      %v185 = vunpack.c.l.bf16 %v177
      %v186 = vunpack.c.l.bf16 %v178
      %v187 = vunpack.c.l.bf16 %v179
      %v188 = vunpack.c.l.bf16 %v180
      %v189 = vunpack.c.l.bf16 %v181
      %v190 = vld [vmem:[%s1] sm:$0x1]
      %v192 = vlaneseq
      %v193 = vshrl.u32 %v192, 7
      %v194 = vsub.s32 0, %v193
      %v195 = vrot.slane %v190, %v194
      %v197 = vmul.f32 %v182, %v195
      %v198 = vmul.f32 %v183, %v195
      %v199 = vmul.f32 %v184, %v195
      %v200 = vmul.f32 %v185, %v195
      %v201 = vmul.f32 %v186, %v195
      %v202 = vmul.f32 %v187, %v195
      %v203 = vmul.f32 %v188, %v195
      %v204 = vmul.f32 %v189, %v195
      %v205 = vld [vmem:[%s2] sm:$0x1]
      %v207 = vlaneseq
      %v208 = vshrl.u32 %v207, 7
      %v209 = vsub.s32 0, %v208
      %v210 = vrot.slane %v205, %v209
      %v212 = vadd.f32 %v197, %v210
      %v213 = vadd.f32 %v198, %v210
      %v214 = vadd.f32 %v199, %v210
      %v215 = vadd.f32 %v200, %v210
      %v216 = vadd.f32 %v201, %v210
      %v217 = vadd.f32 %v202, %v210
      %v218 = vadd.f32 %v203, %v210
      %v219 = vadd.f32 %v204, %v210
      %vm220 = vcmp.ge.f32.partialorder %v212, 0.0
      %vm221 = vcmp.ge.f32.partialorder %v213, 0.0
      %vm222 = vcmp.ge.f32.partialorder %v214, 0.0
      %vm223 = vcmp.ge.f32.partialorder %v215, 0.0
      %vm224 = vcmp.ge.f32.partialorder %v216, 0.0
      %vm225 = vcmp.ge.f32.partialorder %v217, 0.0
      %vm226 = vcmp.ge.f32.partialorder %v218, 0.0
      %vm227 = vcmp.ge.f32.partialorder %v219, 0.0
      %v228 = vmul.f32 %v212, 0.2
      %v229 = vmul.f32 %v213, 0.2
      %v230 = vmul.f32 %v214, 0.2
      %v231 = vmul.f32 %v215, 0.2
      %v232 = vmul.f32 %v216, 0.2
      %v233 = vmul.f32 %v217, 0.2
      %v234 = vmul.f32 %v218, 0.2
      %v235 = vmul.f32 %v219, 0.2
      %v236 = vsel %vm220, %v212, %v228
      %v237 = vsel %vm221, %v213, %v229
      %v238 = vsel %vm222, %v214, %v230
      %v239 = vsel %vm223, %v215, %v231
      %v240 = vsel %vm224, %v216, %v232
      %v241 = vsel %vm225, %v217, %v233
      %v242 = vsel %vm226, %v218, %v234
      %v243 = vsel %vm227, %v219, %v235
      %v244 = vpack.c.bf16 %v237, %v236
      %v245 = vpack.c.bf16 %v239, %v238
      %v246 = vpack.c.bf16 %v241, %v240
      %v247 = vpack.c.bf16 %v243, %v242
      %v252 = vunpack.c.l.b16 %v244
      %v253 = vunpack.c.h.b16 %v244
      %v254 = vunpack.c.l.b16 %v245
      %v255 = vunpack.c.h.b16 %v245
      %v256 = vunpack.c.l.b16 %v246
      %v257 = vunpack.c.h.b16 %v246
      %v258 = vunpack.c.l.b16 %v247
      %v259 = vunpack.c.h.b16 %v247
      %v260 = vpack.c.b16 %v252, %v252
      %v261 = vpack.c.b16 %v253, %v253
      %v262 = vpack.c.b16 %v254, %v254
      %v263 = vpack.c.b16 %v255, %v255
      %v264 = vpack.c.b16 %v256, %v256
      %v265 = vpack.c.b16 %v257, %v257
      %v266 = vpack.c.b16 %v258, %v258
      %v267 = vpack.c.b16 %v259, %v259
      %276 = vst [vmem:[%s172] sm:$0xf] %v260
      %277 = vst [vmem:[%s172 + $0x4] sm:$0xf] %v261
      %278 = vst [vmem:[%s172 + $0x8] sm:$0xf] %v262
      %279 = vst [vmem:[%s172 + $0xc] sm:$0xf] %v263
      %280 = vst [vmem:[%s172 + $0x10] sm:$0xf] %v264
      %281 = vst [vmem:[%s172 + $0x14] sm:$0xf] %v265
      %282 = vst [vmem:[%s172 + $0x18] sm:$0xf] %v266
      %283 = vst [vmem:[%s172 + $0x1c] sm:$0xf] %v267
      %s284 = smul.u32 8, %s14
      %p285 = scmp.lt.s32.totalorder %s284, 15
      %s286 = scalar_select %p285, %s284, 15
      %s287 = smul.addr %s286, 4
      %s288 = scalar_lea.vmem %s3, %s287
      // Predicated region
      $region33: #{downsample_forward.3} parent=31 // pred_check
        %p289 = pneg %p100
      $region34: #{downsample_forward.3} parent=31 // pred_check_branch
        %291 = sbr.rel (%p289) target = $region36
      $region35: #{downsample_forward.3} parent=31 // pred_region
        %s292 = smul.u32 8, %s14
      $region36: #{downsample_forward.3} parent=31 // pred_fallthru
        _
    $region32: #{downsample_forward.3} parent=5 // pred_fallthru
      _
    %p293 = scmp.le.s32.totalorder 2, %s9
    // Predicated region
    $region37: #{downsample_forward.3} parent=5 // pred_check
      %p294 = pneg %p293
    $region38: #{downsample_forward.3} parent=5 // pred_check_branch
      %296 = sbr.rel (%p294) target = $region40
    $region39: #{downsample_forward.3} parent=5 // pred_region
      %s297 = ssub.s32 %s9, 2
      // Predicated region
      $region41: #{downsample_forward.3} parent=39 // pred_check
        %p298 = pneg %p106
      $region42: #{downsample_forward.3} parent=39 // pred_check_branch
        %300 = sbr.rel (%p298) target = $region44
      $region43: #{downsample_forward.3} parent=39 // pred_region
        %s301 = smul.u32 8, %s15
        %p302 = scmp.lt.s32.totalorder %s301, 15
        %s303 = scalar_select %p302, %s301, 15
        %s304 = smul.addr %s303, 4
        %s305 = scalar_lea.vmem %s3, %s304
      $region44: #{downsample_forward.3} parent=39 // pred_fallthru
        _
    $region40: #{downsample_forward.3} parent=5 // pred_fallthru
      _
  $region6: #{downsample_forward.3} parent=0 // loop_footer
    %s13 = sadd.s32 1, %s9
  $region7: #{downsample_forward.3} parent=0 // loop_footer_branch
    %8 = sbr.rel target = $region3
  $region8: #{downsample_forward.3} parent=0 // loop_exit
    _

// kernel: downsample_forward.2
$region0: #{downsample_forward.2}
  #allocation0 [shape = 'u32[]', space=smem, size = 0x4, offset = 0x4, fixed_abs, tag = 'smem constant byte address 0x4 - core index']
  #allocation1 [shape = 'u32[144,128]{1,0:T(1,128)}', space=vmem, size = 0x12000, scoped, tag = 'internal scratch']
  %s0 = inlined_call_operand.vmem [shape: bf16[128,128], index: 0, kind: input, shape index: {}]
  %s1 = inlined_call_operand.vmem [shape: bf16[128,128], index: 1, kind: input, shape index: {}]
  %s2 = inlined_call_operand.vmem [shape: bf16[128,128], index: 2, kind: output, shape index: {0}]
  %s3 = inlined_call_operand.vmem [shape: f32[16,128], index: 3, kind: output, shape index: {1}]
  %4 = xla_tuple %s2, %s3
  %s5 = sld [smem:[#allocation0]]
  $region49: #{downsample_forward.2} parent=0
    _
  %s7 = ssub.s32 1, %s5
  %s8 = scalar_select 0, %s7, %s5
  loop: start=0, step=1, limit=4
  $region2: #{downsample_forward.2} parent=0 // loop_pre_header
    _
  $region3: #{downsample_forward.2} parent=0 // loop_header
    %s10 = sphi 0, %s14
    %p11 = scmp.ge.s32.totalorder %s10, 4
    %s17 = sphi 0, %s29
    %s18 = sphi 0, %s25
    %s19 = sphi 0, %s17
    %s20 = sphi 0, %s18
    %s21 = sphi 0, %s19
    %s22 = sphi 0, %s20
    %s32 = sphi 0, %s34
    %s35 = sphi 0, %s32
    %s36 = sphi 0, %s35
    %s52 = sphi 0, %s36
    %s58 = sphi 0, %s60
    %s61 = sphi 0, %s58
    %s62 = sphi 0, %s61
    %s78 = sphi 0, %s62
    %s86 = sphi 0, %s88
    %s89 = sphi 0, %s86
    %s90 = sphi 0, %s89
    %s106 = sphi 0, %s90
    %s114 = sphi 0, %s116
    %s117 = sphi 0, %s114
    %s118 = sphi 0, %s117
    %s134 = sphi 0, %s118
  $region4: #{downsample_forward.2} parent=0 // loop_header_branch
    %13 = sbr.rel (%p11) target = $region8
  $region5: #{downsample_forward.2} parent=0 // loop_body
    %s15 = ssub.s32 %s10, 1
    %s16 = ssub.s32 %s10, 2
    %s23 = sadd.s32 1, %s18
    %p24 = scmp.ge.s32.totalorder %s23, 1
    %s25 = scalar_select %p24, 0, %s23
    %s26 = sadd.s32 1, %s17
    %s27 = scalar_select %p24, %s26, %s17
    %p28 = scmp.ge.s32.totalorder %s27, 2
    %s29 = scalar_select %p28, 0, %s27
    %s30 = ssub.s32 %s17, %s29
    %p31 = scmp.eq.s32.totalorder %s30, 0
    %s33 = sadd.s32 %s32, 1
    %s34 = scalar_select %p31, %s32, %s33
    %p37 = pneg %p31
    %p38 = scmp.eq.s32.totalorder %s10, 1
    %p39 = por %p37, %p38
    %p40 = scmp.ne.s32.totalorder %s32, %s35
    %p41 = scmp.eq.s32.totalorder %s10, 0
    %p42 = por %p40, %p41
    %p43 = scmp.ne.s32.totalorder %s32, %s35
    %p44 = scmp.eq.s32.totalorder %s15, 1
    %p45 = por %p43, %p44
    %p46 = scmp.ne.s32.totalorder %s35, %s36
    %p47 = scmp.eq.s32.totalorder %s15, 0
    %p48 = por %p46, %p47
    %p49 = scmp.ne.s32.totalorder %s35, %s36
    %p50 = scmp.eq.s32.totalorder %s16, 1
    %p51 = por %p49, %p50
    %p53 = scmp.ne.s32.totalorder %s36, %s52
    %p54 = scmp.eq.s32.totalorder %s16, 0
    %p55 = por %p53, %p54
    %s56 = ssub.s32 %s18, %s25
    %p57 = scmp.eq.s32.totalorder %s56, 0
    %s59 = sadd.s32 %s58, 1
    %s60 = scalar_select %p57, %s58, %s59
    %p63 = pneg %p57
    %p64 = scmp.eq.s32.totalorder %s10, 1
    %p65 = por %p63, %p64
    %p66 = scmp.ne.s32.totalorder %s58, %s61
    %p67 = scmp.eq.s32.totalorder %s10, 0
    %p68 = por %p66, %p67
    %p69 = scmp.ne.s32.totalorder %s58, %s61
    %p70 = scmp.eq.s32.totalorder %s15, 1
    %p71 = por %p69, %p70
    %p72 = scmp.ne.s32.totalorder %s61, %s62
    %p73 = scmp.eq.s32.totalorder %s15, 0
    %p74 = por %p72, %p73
    %p75 = scmp.ne.s32.totalorder %s61, %s62
    %p76 = scmp.eq.s32.totalorder %s16, 1
    %p77 = por %p75, %p76
    %p79 = scmp.ne.s32.totalorder %s62, %s78
    %p80 = scmp.eq.s32.totalorder %s16, 0
    %p81 = por %p79, %p80
    %s82 = ssub.s32 %s17, %s29
    %s83 = ssub.s32 %s18, %s25
    %s84 = sor.u32 %s82, %s83
    %p85 = scmp.eq.s32.totalorder %s84, 0
    %s87 = sadd.s32 %s86, 1
    %s88 = scalar_select %p85, %s86, %s87
    %p91 = pneg %p85
    %p92 = scmp.eq.s32.totalorder %s10, 1
    %p93 = por %p91, %p92
    %p94 = scmp.ne.s32.totalorder %s86, %s89
    %p95 = scmp.eq.s32.totalorder %s10, 0
    %p96 = por %p94, %p95
    %p97 = scmp.ne.s32.totalorder %s86, %s89
    %p98 = scmp.eq.s32.totalorder %s15, 1
    %p99 = por %p97, %p98
    %p100 = scmp.ne.s32.totalorder %s89, %s90
    %p101 = scmp.eq.s32.totalorder %s15, 0
    %p102 = por %p100, %p101
    %p103 = scmp.ne.s32.totalorder %s89, %s90
    %p104 = scmp.eq.s32.totalorder %s16, 1
    %p105 = por %p103, %p104
    %p107 = scmp.ne.s32.totalorder %s90, %s106
    %p108 = scmp.eq.s32.totalorder %s16, 0
    %p109 = por %p107, %p108
    %s110 = ssub.s32 %s17, %s29
    %s111 = ssub.s32 %s18, %s25
    %s112 = sor.u32 %s110, %s111
    %p113 = scmp.eq.s32.totalorder %s112, 0
    %s115 = sadd.s32 %s114, 1
    %s116 = scalar_select %p113, %s114, %s115
    %p119 = pneg %p113
    %p120 = scmp.eq.s32.totalorder %s10, 1
    %p121 = por %p119, %p120
    %p122 = scmp.ne.s32.totalorder %s114, %s117
    %p123 = scmp.eq.s32.totalorder %s10, 0
    %p124 = por %p122, %p123
    %p125 = scmp.ne.s32.totalorder %s114, %s117
    %p126 = scmp.eq.s32.totalorder %s15, 1
    %p127 = por %p125, %p126
    %p128 = scmp.ne.s32.totalorder %s117, %s118
    %p129 = scmp.eq.s32.totalorder %s15, 0
    %p130 = por %p128, %p129
    %p131 = scmp.ne.s32.totalorder %s117, %s118
    %p132 = scmp.eq.s32.totalorder %s16, 1
    %p133 = por %p131, %p132
    %p135 = scmp.ne.s32.totalorder %s118, %s134
    %p136 = scmp.eq.s32.totalorder %s16, 0
    %p137 = por %p135, %p136
    %p138 = scmp.le.s32.totalorder 1, %s10
    %p139 = scmp.lt.s32.totalorder %s10, 3
    %p140 = pnand %p138, %p139
    %p141 = pneg %p140
    // Predicated region
    $region9: #{downsample_forward.2} parent=5 // pred_check
      _
    $region10: #{downsample_forward.2} parent=5 // pred_check_branch
      %143 = sbr.rel (%p140) target = $region12
    $region11: #{downsample_forward.2} parent=5 // pred_region
      %s144 = ssub.s32 %s10, 1
      // Predicated region
      $region13: #{downsample_forward.2} parent=11 // pred_check
        %p145 = pneg %p74
      $region14: #{downsample_forward.2} parent=11 // pred_check_branch
        %147 = sbr.rel (%p145) target = $region16
      $region15: #{downsample_forward.2} parent=11 // pred_region
        %p148 = scmp.lt.s32.totalorder %s20, 0
        %s149 = scalar_select %p148, %s20, 0
        %s150 = smul.addr %s149, 4
        %s151 = scalar_lea.vmem %s1, %s150
      $region16: #{downsample_forward.2} parent=11 // pred_fallthru
        _
    $region12: #{downsample_forward.2} parent=5 // pred_fallthru
      _
    %p152 = scmp.lt.s32.totalorder %s10, 2
    // Predicated region
    $region17: #{downsample_forward.2} parent=5 // pred_check
      %p153 = pneg %p152
    $region18: #{downsample_forward.2} parent=5 // pred_check_branch
      %155 = sbr.rel (%p153) target = $region20
    $region19: #{downsample_forward.2} parent=5 // pred_region
      // Predicated region
      $region21: #{downsample_forward.2} parent=19 // pred_check
        %p156 = pneg %p42
      $region22: #{downsample_forward.2} parent=19 // pred_check_branch
        %158 = sbr.rel (%p156) target = $region24
      $region23: #{downsample_forward.2} parent=19 // pred_region
        %s159 = smul.u32 8, %s17
        %p160 = scmp.lt.s32.totalorder %s159, 15
        %s161 = scalar_select %p160, %s159, 15
        %s162 = smul.addr %s161, 4
        %s163 = scalar_lea.vmem %s0, %s162
        %s164 = smul.u32 8, %s17
      $region24: #{downsample_forward.2} parent=19 // pred_fallthru
        _
    $region20: #{downsample_forward.2} parent=5 // pred_fallthru
      _
    %p165 = scmp.le.s32.totalorder 1, %s10
    %p166 = scmp.lt.s32.totalorder %s10, 3
    %p167 = pnand %p165, %p166
    %p168 = pneg %p167
    // Predicated region
    $region25: #{downsample_forward.2} parent=5 // pred_check
      _
    $region26: #{downsample_forward.2} parent=5 // pred_check_branch
      %170 = sbr.rel (%p167) target = $region28
    $region27: #{downsample_forward.2} parent=5 // pred_region
      %s171 = ssub.s32 %s10, 1
      %s172 = smul.u32 8, %s19
      %p173 = scmp.lt.s32.totalorder %s172, 15
      %s174 = scalar_select %p173, %s172, 15
      %s175 = smul.addr %s174, 4
      %s176 = scalar_lea.vmem %s0, %s175
      %p177 = pneg %p48
      %p178 = pneg %p45
      %p179 = scmp.lt.s32.totalorder %s20, 0
      %s180 = scalar_select %p179, %s20, 0
      %s181 = smul.addr %s180, 4
      %s182 = scalar_lea.vmem %s1, %s181
      %p183 = pneg %p74
      %p184 = pneg %p71
      %p185 = pneg %p102
      %p186 = pneg %p99
      %s187 = smul.u32 8, %s19
      %p188 = scmp.lt.s32.totalorder %s187, 15
      %s189 = scalar_select %p188, %s187, 15
      %p190 = scmp.lt.s32.totalorder %s20, 0
      %s191 = scalar_select %p190, %s20, 0
      %s192 = sadd.s32 %s191, %s189
      %s193 = smul.addr %s192, 4
      %s194 = scalar_lea.vmem %s2, %s193
      %p195 = pneg %p130
      %p196 = pneg %p127
      %p197 = scmp.lt.s32.totalorder %s19, 1
      %s198 = scalar_select %p197, %s19, 1
      %p199 = scmp.lt.s32.totalorder %s20, 0
      %s200 = scalar_select %p199, %s20, 0
      %s201 = sadd.s32 %s200, %s198
      %s202 = smul.addr %s201, 8
      %s203 = scalar_lea.vmem %s3, %s202
      %s204 = smul.u32 8, %s19
      %p205 = scmp.lt.s32.totalorder %s204, 15
      %s206 = scalar_select %p205, %s204, 15
      %s207 = smul.addr %s206, 4
      %s208 = scalar_lea.vmem %s0, %s207
      %s209 = smul.u32 8, %s19
      %p210 = scmp.lt.s32.totalorder %s20, 0
      %s211 = scalar_select %p210, %s20, 0
      %s212 = smul.addr %s211, 4
      %s213 = scalar_lea.vmem %s1, %s212
      %s214 = smul.u32 8, %s19
      %p215 = scmp.lt.s32.totalorder %s214, 15
      %s216 = scalar_select %p215, %s214, 15
      %p217 = scmp.lt.s32.totalorder %s20, 0
      %s218 = scalar_select %p217, %s20, 0
      %s219 = sadd.s32 %s218, %s216
      %s220 = smul.addr %s219, 4
      %s221 = scalar_lea.vmem %s2, %s220
      %s222 = smul.u32 8, %s19
      %p223 = scmp.lt.s32.totalorder %s19, 1
      %s224 = scalar_select %p223, %s19, 1
      %p225 = scmp.lt.s32.totalorder %s20, 0
      %s226 = scalar_select %p225, %s20, 0
      %s227 = sadd.s32 %s226, %s224
      %s228 = smul.addr %s227, 8
      %s229 = scalar_lea.vmem %s3, %s228
      %v231 = vld [vmem:[%s208] sm:$0xf]
      %v232 = vld [vmem:[%s208 + $0x4] sm:$0xf]
      %v233 = vld [vmem:[%s208 + $0x8] sm:$0xf]
      %v234 = vld [vmem:[%s208 + $0xc] sm:$0xf]
      %v235 = vld [vmem:[%s208 + $0x10] sm:$0xf]
      %v236 = vld [vmem:[%s208 + $0x14] sm:$0xf]
      %v237 = vld [vmem:[%s208 + $0x18] sm:$0xf]
      %v238 = vld [vmem:[%s208 + $0x1c] sm:$0xf]
      %v239 = vld [vmem:[%s213] sm:$0xf]
      %v240 = vld [vmem:[%s213 + $0x4] sm:$0xf]
      %v241 = vld [vmem:[%s213 + $0x8] sm:$0xf]
      %v242 = vld [vmem:[%s213 + $0xc] sm:$0xf]
      %v243 = vld [vmem:[%s213 + $0x10] sm:$0xf]
      %v244 = vld [vmem:[%s213 + $0x14] sm:$0xf]
      %v245 = vld [vmem:[%s213 + $0x18] sm:$0xf]
      %v246 = vld [vmem:[%s213 + $0x1c] sm:$0xf]
      %v247 = vld [vmem:[%s213 + $0x20] sm:$0xf]
      %v248 = vld [vmem:[%s213 + $0x24] sm:$0xf]
      %v249 = vld [vmem:[%s213 + $0x28] sm:$0xf]
      %v250 = vld [vmem:[%s213 + $0x2c] sm:$0xf]
      %v251 = vld [vmem:[%s213 + $0x30] sm:$0xf]
      %v252 = vld [vmem:[%s213 + $0x34] sm:$0xf]
      %v253 = vld [vmem:[%s213 + $0x38] sm:$0xf]
      %v254 = vld [vmem:[%s213 + $0x3c] sm:$0xf]
      %v263 = vunpack.c.l.b16 %v231
      %v264 = vunpack.c.l.b16 %v232
      %v265 = vunpack.c.l.b16 %v233
      %v266 = vunpack.c.l.b16 %v234
      %v267 = vunpack.c.l.b16 %v235
      %v268 = vunpack.c.l.b16 %v236
      %v269 = vunpack.c.l.b16 %v237
      %v270 = vunpack.c.l.b16 %v238
      %v271 = vpack.c.b16 %v264, %v263
      %v272 = vpack.c.b16 %v266, %v265
      %v273 = vpack.c.b16 %v268, %v267
      %v274 = vpack.c.b16 %v270, %v269
      %v295 = vunpack.c.l.b16 %v239
      %v296 = vunpack.c.l.b16 %v240
      %v297 = vunpack.c.l.b16 %v241
      %v298 = vunpack.c.l.b16 %v242
      %v299 = vunpack.c.l.b16 %v243
      %v300 = vunpack.c.l.b16 %v244
      %v301 = vunpack.c.l.b16 %v245
      %v302 = vunpack.c.l.b16 %v246
      %v303 = vunpack.c.l.b16 %v247
      %v304 = vunpack.c.l.b16 %v248
      %v305 = vunpack.c.l.b16 %v249
      %v306 = vunpack.c.l.b16 %v250
      %v307 = vunpack.c.l.b16 %v251
      %v308 = vunpack.c.l.b16 %v252
      %v309 = vunpack.c.l.b16 %v253
      %v310 = vunpack.c.l.b16 %v254
      %v311 = vpack.c.b16 %v296, %v295
      %v312 = vpack.c.b16 %v298, %v297
      %v313 = vpack.c.b16 %v300, %v299
      %v314 = vpack.c.b16 %v302, %v301
      %v315 = vpack.c.b16 %v304, %v303
      %v316 = vpack.c.b16 %v306, %v305
      %v317 = vpack.c.b16 %v308, %v307
      %v318 = vpack.c.b16 %v310, %v309
      %327 = vmatprep.subr.bf16.mxu0 0
      %328 = vmatpush1.bf16.msra.mxu0 %v311
      %329 = vmatprep.subr.bf16.mxu0 0
      %330 = vmatpush1.bf16.msra.mxu0 %v312
      %331 = vmatprep.subr.bf16.mxu0 0
      %332 = vmatpush1.bf16.msra.mxu0 %v313
      %333 = vmatprep.subr.bf16.mxu0 0
      %334 = vmatpush1.bf16.msra.mxu0 %v314
      %335 = vmatprep.subr.bf16.mxu0 0
      %336 = vmatpush1.bf16.msra.mxu0 %v315
      %337 = vmatprep.subr.bf16.mxu0 0
      %338 = vmatpush1.bf16.msra.mxu0 %v316
      %339 = vmatprep.subr.bf16.mxu0 0
      %340 = vmatpush1.bf16.msra.mxu0 %v317
      %341 = vmatprep.subr.bf16.mxu0 0
      %342 = vmatpush1.bf16.msra.mxu0 %v318
      %343 = vmatprep.subr.bf16.mxu0 0
      %344 = vmatpush1.bf16.msra.mxu0 0
      %345 = vmatprep.subr.bf16.mxu0 0
      %346 = vmatpush1.bf16.msra.mxu0 0
      %347 = vmatprep.subr.bf16.mxu0 0
      %348 = vmatpush1.bf16.msra.mxu0 0
      %349 = vmatprep.subr.bf16.mxu0 0
      %350 = vmatpush1.bf16.msra.mxu0 0
      %351 = vmatprep.subr.bf16.mxu0 0
      %352 = vmatpush1.bf16.msra.mxu0 0
      %353 = vmatprep.subr.bf16.mxu0 0
      %354 = vmatpush1.bf16.msra.mxu0 0
      %355 = vmatprep.subr.bf16.mxu0 0
      %356 = vmatpush1.bf16.msra.mxu0 0
      %357 = vmatprep.subr.bf16.mxu0 0
      %358 = vmatpush1.bf16.msra.mxu0 0
      %359 = vmatprep.mubr.bf16.mxu0 0
      %360 = vmatmul.mubr.bf16.gmra.mrb[0].mxu0 %v271
      %v361 = vpop.f32.mrb[0].mxu0
      %v362 = vadd.f32 0.0, %v361
      %v363 = vpop.f32.mrb[0].mxu0
      %v364 = vpop.f32.mrb[0].mxu0
      %v365 = vadd.f32 0.0, %v364
      %v366 = vpop.f32.mrb[0].mxu0
      %367 = vmatprep.mubr.bf16.mxu0 0
      %368 = vmatmul.mubr.bf16.gmra.mrb[0].mxu0 %v272
      %v369 = vpop.f32.mrb[0].mxu0
      %v370 = vadd.f32 0.0, %v369
      %v371 = vpop.f32.mrb[0].mxu0
      %v372 = vpop.f32.mrb[0].mxu0
      %v373 = vadd.f32 0.0, %v372
      %v374 = vpop.f32.mrb[0].mxu0
      %375 = vmatprep.mubr.bf16.mxu0 0
      %376 = vmatmul.mubr.bf16.gmra.mrb[0].mxu0 %v273
      %v377 = vpop.f32.mrb[0].mxu0
      %v378 = vadd.f32 0.0, %v377
      %v379 = vpop.f32.mrb[0].mxu0
      %v380 = vpop.f32.mrb[0].mxu0
      %v381 = vadd.f32 0.0, %v380
      %v382 = vpop.f32.mrb[0].mxu0
      %383 = vmatprep.mubr.bf16.mxu0 0
      %384 = vmatmul.mubr.bf16.gmra.mrb[0].mxu0 %v274
      %v385 = vpop.f32.mrb[0].mxu0
      %v386 = vadd.f32 0.0, %v385
      %v387 = vpop.f32.mrb[0].mxu0
      %v388 = vpop.f32.mrb[0].mxu0
      %v389 = vadd.f32 0.0, %v388
      %v390 = vpop.f32.mrb[0].mxu0
      %391 = vdwg.mxu0
      %v392 = vpack.c.bf16 %v365, %v362
      %v393 = vpack.c.bf16 %v373, %v370
      %v394 = vpack.c.bf16 %v381, %v378
      %v395 = vpack.c.bf16 %v389, %v386
      %v400 = vunpack.c.l.b16 %v392
      %v401 = vunpack.c.h.b16 %v392
      %v402 = vunpack.c.l.b16 %v393
      %v403 = vunpack.c.h.b16 %v393
      %v404 = vunpack.c.l.b16 %v394
      %v405 = vunpack.c.h.b16 %v394
      %v406 = vunpack.c.l.b16 %v395
      %v407 = vunpack.c.h.b16 %v395
      %v408 = vpack.c.b16 %v400, %v400
      %v409 = vpack.c.b16 %v401, %v401
      %v410 = vpack.c.b16 %v402, %v402
      %v411 = vpack.c.b16 %v403, %v403
      %v412 = vpack.c.b16 %v404, %v404
      %v413 = vpack.c.b16 %v405, %v405
      %v414 = vpack.c.b16 %v406, %v406
      %v415 = vpack.c.b16 %v407, %v407
      %424 = vst [vmem:[%s221] sm:$0xf] %v408
      %425 = vst [vmem:[%s221 + $0x4] sm:$0xf] %v409
      %426 = vst [vmem:[%s221 + $0x8] sm:$0xf] %v410
      %427 = vst [vmem:[%s221 + $0xc] sm:$0xf] %v411
      %428 = vst [vmem:[%s221 + $0x10] sm:$0xf] %v412
      %429 = vst [vmem:[%s221 + $0x14] sm:$0xf] %v413
      %430 = vst [vmem:[%s221 + $0x18] sm:$0xf] %v414
      %431 = vst [vmem:[%s221 + $0x1c] sm:$0xf] %v415
      %v432 = vadd.f32 %v362, %v365
      %v433 = vadd.f32 %v432, %v370
      %v434 = vadd.f32 %v433, %v373
      %v435 = vadd.f32 %v434, %v378
      %v436 = vadd.f32 %v435, %v381
      %v437 = vadd.f32 %v436, %v386
      %v438 = vadd.f32 %v437, %v389
      %v439 = vrot.slane %v438, 4
      %v440 = vadd.f32 %v438, %v439
      %v441 = vrot.slane %v440, 2
      %v442 = vadd.f32 %v440, %v441
      %v443 = vrot.slane %v442, 1
      %v444 = vadd.f32 %v442, %v443
      %v445 = vmul.f32 %v362, %v362
      %v446 = vmul.f32 %v365, %v365
      %v447 = vmul.f32 %v370, %v370
      %v448 = vmul.f32 %v373, %v373
      %v449 = vmul.f32 %v378, %v378
      %v450 = vmul.f32 %v381, %v381
      %v451 = vmul.f32 %v386, %v386
      %v452 = vmul.f32 %v389, %v389
      %v453 = vadd.f32 %v445, %v446
      %v454 = vadd.f32 %v453, %v447
      %v455 = vadd.f32 %v454, %v448
      %v456 = vadd.f32 %v455, %v449
      %v457 = vadd.f32 %v456, %v450
      %v458 = vadd.f32 %v457, %v451
      %v459 = vadd.f32 %v458, %v452
      %v460 = vrot.slane %v459, 4
      %v461 = vadd.f32 %v459, %v460
      %v462 = vrot.slane %v461, 2
      %v463 = vadd.f32 %v461, %v462
      %v464 = vrot.slane %v463, 1
      %v465 = vadd.f32 %v463, %v464
      %v466 = vlaneseq
      %v467 = vshrl.u32 %v466, 7
      %vm468 = vcmp.eq.s32.totalorder %v467, 0
      %vm469 = vcmp.eq.s32.totalorder %v467, 1
      %v470 = vsel %vm469, %v465, 0.0
      %v471 = vsel %vm468, %v444, %v470
      %472 = vst [vmem:[%s229] sm:$0xff] %v471
      %s473 = smul.u32 8, %s19
      %p474 = scmp.lt.s32.totalorder %s473, 15
      %s475 = scalar_select %p474, %s473, 15
      %p476 = scmp.lt.s32.totalorder %s20, 0
      %s477 = scalar_select %p476, %s20, 0
      %s478 = sadd.s32 %s477, %s475
      %s479 = smul.addr %s478, 4
      %s480 = scalar_lea.vmem %s2, %s479
      %p481 = scmp.lt.s32.totalorder %s19, 1
      %s482 = scalar_select %p481, %s19, 1
      %p483 = scmp.lt.s32.totalorder %s20, 0
      %s484 = scalar_select %p483, %s20, 0
      %s485 = sadd.s32 %s484, %s482
      %s486 = smul.addr %s485, 8
      %s487 = scalar_lea.vmem %s3, %s486
      // Predicated region
      $region29: #{downsample_forward.2} parent=27 // pred_check
        %p488 = pneg %p99
      $region30: #{downsample_forward.2} parent=27 // pred_check_branch
        %490 = sbr.rel (%p488) target = $region32
      $region31: #{downsample_forward.2} parent=27 // pred_region
        %s491 = smul.u32 8, %s19
      $region32: #{downsample_forward.2} parent=27 // pred_fallthru
        _
      // Predicated region
      $region33: #{downsample_forward.2} parent=27 // pred_check
        %p492 = pneg %p127
      $region34: #{downsample_forward.2} parent=27 // pred_check_branch
        %494 = sbr.rel (%p492) target = $region36
      $region35: #{downsample_forward.2} parent=27 // pred_region
        _
      $region36: #{downsample_forward.2} parent=27 // pred_fallthru
        _
    $region28: #{downsample_forward.2} parent=5 // pred_fallthru
      _
    %p495 = scmp.le.s32.totalorder 2, %s10
    // Predicated region
    $region37: #{downsample_forward.2} parent=5 // pred_check
      %p496 = pneg %p495
    $region38: #{downsample_forward.2} parent=5 // pred_check_branch
      %498 = sbr.rel (%p496) target = $region40
    $region39: #{downsample_forward.2} parent=5 // pred_region
      %s499 = ssub.s32 %s10, 2
      // Predicated region
      $region41: #{downsample_forward.2} parent=39 // pred_check
        %p500 = pneg %p105
      $region42: #{downsample_forward.2} parent=39 // pred_check_branch
        %502 = sbr.rel (%p500) target = $region44
      $region43: #{downsample_forward.2} parent=39 // pred_region
        %s503 = smul.u32 8, %s21
        %p504 = scmp.lt.s32.totalorder %s503, 15
        %s505 = scalar_select %p504, %s503, 15
        %p506 = scmp.lt.s32.totalorder %s22, 0
        %s507 = scalar_select %p506, %s22, 0
        %s508 = sadd.s32 %s507, %s505
        %s509 = smul.addr %s508, 4
        %s510 = scalar_lea.vmem %s2, %s509
      $region44: #{downsample_forward.2} parent=39 // pred_fallthru
        _
      // Predicated region
      $region45: #{downsample_forward.2} parent=39 // pred_check
        %p511 = pneg %p133
      $region46: #{downsample_forward.2} parent=39 // pred_check_branch
        %513 = sbr.rel (%p511) target = $region48
      $region47: #{downsample_forward.2} parent=39 // pred_region
        %p514 = scmp.lt.s32.totalorder %s21, 1
        %s515 = scalar_select %p514, %s21, 1
        %p516 = scmp.lt.s32.totalorder %s22, 0
        %s517 = scalar_select %p516, %s22, 0
        %s518 = sadd.s32 %s517, %s515
        %s519 = smul.addr %s518, 8
        %s520 = scalar_lea.vmem %s3, %s519
      $region48: #{downsample_forward.2} parent=39 // pred_fallthru
        _
    $region40: #{downsample_forward.2} parent=5 // pred_fallthru
      _
  $region6: #{downsample_forward.2} parent=0 // loop_footer
    %s14 = sadd.s32 1, %s10
  $region7: #{downsample_forward.2} parent=0 // loop_footer_branch
    %9 = sbr.rel target = $region3
  $region8: #{downsample_forward.2} parent=0 // loop_exit
    _

</llo_original>
